<compile_context>
chip_gen: v7x
topology: tpu7x:2x2x1
jax: 0.10.0
libtpu: 0.0.40
codegen_flags: <defaults>
</compile_context>

<pallas_src>
import jax
import jax.numpy as jnp
from jax.experimental import pallas as pl
from jax.experimental.pallas import tpu as pltpu

_NUM_CORES = 2  # leading "parallel" grid axis; harmless on 1-TC chips


def _round_up(n, m):
    return ((n + m - 1) // m) * m


def _cdiv(a, b):
    return (a + b - 1) // b


def _sublane_multiple(dtype):
    itemsize = jnp.dtype(dtype).itemsize
    return 8 * max(1, 4 // itemsize)      # 8 for f32, 16 for bf16, 32 for int8


# --------------------------------------------------------------------------
# Packed (lane-dense) path: x viewed as (B*F/128, 128), F | 128, B % (128/F)==0
# --------------------------------------------------------------------------
def _make_packed_kernel(b_true, F, C, R, spr, tiles_per_core):
    spt = R * spr  # samples per tile

    def kernel(labels_ref, x_ref, centers_ref, out_ref, acc_ref):
        core = pl.program_id(0)
        step = pl.program_id(1)

        @pl.when(step == 0)
        def _():
            acc_ref[...] = jnp.zeros_like(acc_ref)

        x = x_ref[...].astype(jnp.float32)            # (R, 128) packed
        lbl = labels_ref[...]                         # (R, 128) int32
        ct = centers_ref[...].astype(jnp.float32)     # (C, 128) feature-tiled

        # Gather centers[labels] with a VPU select loop (small C).
        center = jnp.zeros_like(x)
        for c in range(C):
            center = jnp.where(lbl == c, ct[c:c + 1, :], center)

        diff = x - center
        sq = diff * diff

        if F == 1:
            dist = sq
        else:
            # Segment-sum over the F consecutive lanes of each sample; the
            # per-sample distance lands on lanes l % F == 0, zeros elsewhere.
            li = jax.lax.broadcasted_iota(jnp.int32, (128, 128), 0)
            lj = jax.lax.broadcasted_iota(jnp.int32, (128, 128), 1)
            seg = jnp.where((li // F == lj // F) & (lj % F == 0), 1.0, 0.0)
            dist = jnp.dot(sq, seg, preferred_element_type=jnp.float32)

        dist = jnp.clip(dist, 1e-12, 1.0e12)

        # Mask: only lanes holding a per-sample distance, and only samples
        # that logically exist (handles the ragged last tile and the clamped
        # duplicate tiles of the second core).
        t = core * tiles_per_core + step              # logical tile id
        r_i = jax.lax.broadcasted_iota(jnp.int32, (R, 128), 0)
        l_i = jax.lax.broadcasted_iota(jnp.int32, (R, 128), 1)
        sample_idx = t * spt + r_i * spr + l_i // F
        keep = (l_i % F == 0) & (sample_idx < b_true)
        acc_ref[...] += jnp.where(keep, dist, 0.0)

        @pl.when(step == tiles_per_core - 1)
        def _():
            out_ref[...] = jnp.sum(acc_ref[...]).reshape(1, 1, 1)

    return kernel


# --------------------------------------------------------------------------
# Row path (fallback): x kept as (B, F) tiles.  Used when F does not pack
# cleanly into 128 lanes, B is not a multiple of 128/F, or C is large.
# --------------------------------------------------------------------------
def _make_row_kernel(b_true, F, C, TB, tiles_per_core, use_mxu, centers_dtype):
    def kernel(labels_ref, x_ref, centers_ref, out_ref, acc_ref):
        core = pl.program_id(0)
        step = pl.program_id(1)

        @pl.when(step == 0)
        def _():
            acc_ref[...] = jnp.zeros_like(acc_ref)

        x = x_ref[...].astype(jnp.float32)            # (TB, F)
        lbl = labels_ref[...]                         # (TB, 1) int32

        if use_mxu:
            cls = jax.lax.broadcasted_iota(jnp.int32, (TB, C), 1)
            one_hot = (lbl == cls).astype(centers_dtype)
            center = jnp.dot(one_hot, centers_ref[...],
                             preferred_element_type=jnp.float32)
        else:
            cen = centers_ref[...].astype(jnp.float32)
            center = jnp.zeros((TB, F), jnp.float32)
            for c in range(C):
                center = jnp.where(lbl == c, cen[c:c + 1, :], center)

        diff = x - center
        dist = jnp.sum(diff * diff, axis=-1, keepdims=True)   # (TB, 1)
        dist = jnp.clip(dist, 1e-12, 1.0e12)

        t = core * tiles_per_core + step
        row = jax.lax.broadcasted_iota(jnp.int32, (TB, 1), 0)
        valid = (t * TB + row) < b_true
        acc_ref[...] += jnp.where(valid, dist, 0.0)

        @pl.when(step == tiles_per_core - 1)
        def _():
            out_ref[...] = jnp.sum(acc_ref[...]).reshape(1, 1, 1)

    return kernel


def center_loss(x, centers, labels=None, *, packed_row_tile=512, row_tile=2048,
                select_max_classes=256):
    """x: (B, F) float, centers: (C, F) float, labels: (B,) int or None."""
    B, F = x.shape
    C, Fc = centers.shape
    assert Fc == F

    if labels is None:
        labels = jnp.zeros((B,), dtype=jnp.int32)
    labels = labels.astype(jnp.int32)

    itemsize = jnp.dtype(x.dtype).itemsize
    sub = _sublane_multiple(x.dtype)

    packed_ok = (F <= 64 and 128 % F == 0 and B % (128 // F) == 0
                 and C <= select_max_classes)

    if packed_ok:
        spr = 128 // F                               # samples per packed row
        rows_total = (B * F) // 128
        R = min(rows_total, _round_up(packed_row_tile, sub))
        num_tiles = _cdiv(rows_total, R)
        tiles_per_core = _cdiv(num_tiles, _NUM_CORES)

        x_packed = x.reshape(rows_total, 128)                       # free
        labels_rep = jnp.repeat(labels, F).reshape(rows_total, 128)
        centers_tiled = jnp.tile(centers, (1, spr))                 # (C, 128)

        kernel = _make_packed_kernel(B, F, C, R, spr, tiles_per_core)

        def data_map(c, s):
            return (jnp.minimum(c * tiles_per_core + s, num_tiles - 1), 0)

        grid = (_NUM_CORES, tiles_per_core)
        in_specs = [
            pl.BlockSpec((R, 128), data_map),                 # labels (packed)
            pl.BlockSpec((R, 128), data_map),                 # x (packed)
            pl.BlockSpec((C, 128), lambda c, s: (0, 0)),      # centers resident
        ]
        scratch = [pltpu.VMEM((R, 128), jnp.float32)]
        args = (labels_rep, x_packed, centers_tiled)
        flops = rows_total * 128 * (2 * C + 2 * 128)
        bytes_accessed = (rows_total * 128 * (itemsize + 4)
                          + C * 128 * centers.dtype.itemsize + _NUM_CORES * 4)
    else:
        f_lanes = _round_up(F, 128)
        budget = 6 * 1024 * 1024   # x tile VMEM budget (double-buffered)
        cap = max(sub, (budget // (2 * f_lanes * itemsize)) // sub * sub)
        tb_req = max(sub, min(_round_up(row_tile, sub), cap))
        TB = min(B, tb_req)        # TB == B -> full-dim block (always legal)
        num_tiles = _cdiv(B, TB)
        tiles_per_core = _cdiv(num_tiles, _NUM_CORES)
        use_mxu = C > select_max_classes

        kernel = _make_row_kernel(B, F, C, TB, tiles_per_core, use_mxu,
                                  centers.dtype)
        labels2d = labels.reshape(B, 1)

        def data_map(c, s):
            return (jnp.minimum(c * tiles_per_core + s, num_tiles - 1), 0)

        grid = (_NUM_CORES, tiles_per_core)
        in_specs = [
            pl.BlockSpec((TB, 1), data_map),                  # labels
            pl.BlockSpec((TB, F), data_map),                  # x
            pl.BlockSpec((C, F), lambda c, s: (0, 0)),        # centers resident
        ]
        scratch = [pltpu.VMEM((TB, 1), jnp.float32)]
        args = (labels2d, x, centers)
        flops = (2 * B * C * F) if use_mxu else (4 * B * F + 2 * B * C)
        bytes_accessed = (B * F * itemsize + B * 4
                          + C * F * centers.dtype.itemsize + _NUM_CORES * 4)

    out = pl.pallas_call(
        kernel,
        out_shape=jax.ShapeDtypeStruct((_NUM_CORES, 1, 1), jnp.float32),
        grid_spec=pltpu.PrefetchScalarGridSpec(
            num_scalar_prefetch=0,
            grid=grid,
            in_specs=in_specs,
            out_specs=pl.BlockSpec((1, 1, 1), lambda c, s: (c, 0, 0)),
            scratch_shapes=scratch,
        ),
        compiler_params=pltpu.CompilerParams(
            dimension_semantics=("parallel", "arbitrary"),
            vmem_limit_bytes=32 * 1024 * 1024,    # safe on v5e/v6e/v7x
        ),
        cost_estimate=pl.CostEstimate(flops=int(flops), transcendentals=0,
                                      bytes_accessed=int(bytes_accessed)),
    )(*args)

    # Per-core partial sums -> mean over the true batch size.
    return jnp.sum(out) / B


def center_loss_ref(x, centers, labels=None):
    """Plain-JAX reference (mirrors the PyTorch forward)."""
    B = x.shape[0]
    if labels is None:
        labels = jnp.zeros((B,), dtype=jnp.int32)
    center = centers[labels]
    dist = jnp.sum((x - center) ** 2, axis=-1)
    return jnp.mean(jnp.clip(dist, 1e-12, 1.0e12))


if __name__ == "__main__":
    key = jax.random.PRNGKey(0)

    def check(name, x, centers, labels, **kw):
        loss = center_loss(x, centers, labels, **kw)
        jax.block_until_ready(loss)
        ref = center_loss_ref(x, centers, labels)
        assert jnp.allclose(loss, ref, rtol=1e-5, atol=1e-5), (name, loss, ref)

    # 1) Module defaults (num_class=10, num_feature=2), tiny batch -> row path.
    k1, k2, k3, key = jax.random.split(key, 4)
    centers = jax.random.normal(k1, (10, 2), dtype=jnp.float32)
    x = jax.random.normal(k2, (8, 2), dtype=jnp.float32)
    labels = jax.random.randint(k3, (8,), 0, 10, dtype=jnp.int32)
    check("row/select", x, centers, labels)
    check("row/select labels=None", x, centers, None)

    # 2) Packed lane-dense path, single tile per core.
    k1, k2, k3, key = jax.random.split(key, 4)
    centers2 = jax.random.normal(k1, (10, 2), dtype=jnp.float32)
    x2 = jax.random.normal(k2, (256, 2), dtype=jnp.float32)
    labels2 = jax.random.randint(k3, (256,), 0, 10, dtype=jnp.int32)
    check("packed/single-tile", x2, centers2, labels2)

    # 3) Packed path, multi-tile + ragged last tile + 2-core split.
    k1, k2, k3, key = jax.random.split(key, 4)
    centers3 = jax.random.normal(k1, (10, 2), dtype=jnp.float32)
    x3 = jax.random.normal(k2, (1152, 2), dtype=jnp.float32)
    labels3 = jax.random.randint(k3, (1152,), 0, 10, dtype=jnp.int32)
    check("packed/multi-tile", x3, centers3, labels3, packed_row_tile=8)

    # 4) Row path with one-hot MXU gather (C > 256), multi-tile ragged batch.
    k1, k2, k3, key = jax.random.split(key, 4)
    centers4 = jax.random.normal(k1, (300, 24), dtype=jnp.float32)
    x4 = jax.random.normal(k2, (50, 24), dtype=jnp.float32)
    labels4 = jax.random.randint(k3, (50,), 0, 300, dtype=jnp.int32)
    check("row/mxu", x4, centers4, labels4, row_tile=16)

    # 5) Packed path with F=16 (16-lane segment sum) + fully clamped core tile.
    k1, k2, k3, key = jax.random.split(key, 4)
    centers5 = jax.random.normal(k1, (12, 16), dtype=jnp.float32)
    x5 = jax.random.normal(k2, (192, 16), dtype=jnp.float32)
    labels5 = jax.random.randint(k3, (192,), 0, 12, dtype=jnp.int32)
    check("packed/F16", x5, centers5, labels5, packed_row_tile=8)

    print("KERNEL_OK")
</pallas_src>

<mosaic_0001>
module attributes {stable_mosaic.version = 11 : i64} {
  func.func @kernel(%arg0: i32, %arg1: i32, %arg2: memref<8x1xi32, #tpu.memory_space<vmem>>, %arg3: memref<8x2xf32, #tpu.memory_space<vmem>>, %arg4: memref<10x2xf32, #tpu.memory_space<vmem>>, %arg5: memref<1x1x1xf32, #tpu.memory_space<vmem>>, %arg6: memref<8x1xf32, #tpu.memory_space<vmem>>) attributes {dimension_semantics = [#tpu.dimension_semantics<parallel>, #tpu.dimension_semantics<arbitrary>], iteration_bounds = array<i64: 2, 1>, scalar_prefetch = 0 : i64, scratch_operands = 1 : i64, tpu.core_type = #tpu.core_type<tc>, window_params = [{transform_indices = @transform_0, window_bounds = array<i64: 8, 1>}, {transform_indices = @transform_1, window_bounds = array<i64: 8, 2>}, {pipeline_mode = #tpu.pipeline_mode<synchronous>, transform_indices = @transform_2, window_bounds = array<i64: 10, 2>}, {transform_indices = @transform_3, window_bounds = array<i64: 1, 1, 1>}]} {
    %c0_i32 = arith.constant 0 : i32
    %0 = arith.cmpi eq, %arg1, %c0_i32 : i32
    %1 = arith.extui %0 : i1 to i32
    %c0_i32_0 = arith.constant 0 : i32
    %2 = arith.cmpi ne, %1, %c0_i32_0 : i32
    scf.if %2 {
      %cst_20 = arith.constant 0.000000e+00 : f32
      %111 = vector.broadcast %cst_20 : f32 to vector<8x1xf32>
      %c0_21 = arith.constant 0 : index
      %c0_22 = arith.constant 0 : index
      %112 = vector.load %arg6[%c0_21, %c0_22] : memref<8x1xf32, #tpu.memory_space<vmem>>, vector<8x1xf32>
      tpu.vector_store %arg6[%c0_21, %c0_22], %111 {strides = array<i32>} : memref<8x1xf32, #tpu.memory_space<vmem>>, vector<8x1xf32>,
    } else {
    }
    %c0 = arith.constant 0 : index
    %c0_1 = arith.constant 0 : index
    %3 = vector.load %arg3[%c0, %c0_1] : memref<8x2xf32, #tpu.memory_space<vmem>>, vector<8x2xf32>
    %c0_2 = arith.constant 0 : index
    %c0_3 = arith.constant 0 : index
    %4 = vector.load %arg2[%c0_2, %c0_3] : memref<8x1xi32, #tpu.memory_space<vmem>>, vector<8x1xi32>
    %c0_4 = arith.constant 0 : index
    %c0_5 = arith.constant 0 : index
    %5 = vector.load %arg4[%c0_4, %c0_5] : memref<10x2xf32, #tpu.memory_space<vmem>>, vector<10x2xf32>
    %cst = arith.constant 0.000000e+00 : f32
    %6 = vector.broadcast %cst : f32 to vector<8x2xf32>
    %c0_i32_6 = arith.constant 0 : i32
    %7 = vector.broadcast %c0_i32_6 : i32 to vector<8x1xi32>
    %8 = arith.cmpi eq, %4, %7 : vector<8x1xi32>
    %9 = vector.extract_strided_slice %5 {offsets = [0, 0], sizes = [1, 2], strides = [1, 1]} : vector<10x2xf32> to vector<1x2xf32>
    %10 = vector.shape_cast %8 : vector<8x1xi1> to vector<8x1xi1>
    %11 = vector.broadcast %10 : vector<8x1xi1> to vector<8x2xi1>
    %12 = vector.shape_cast %9 : vector<1x2xf32> to vector<1x2xf32>
    %13 = vector.broadcast %12 : vector<1x2xf32> to vector<8x2xf32>
    %14 = arith.select %11, %13, %6 : vector<8x2xi1>, vector<8x2xf32>
    %c1_i32 = arith.constant 1 : i32
    %15 = vector.broadcast %c1_i32 : i32 to vector<8x1xi32>
    %16 = arith.cmpi eq, %4, %15 : vector<8x1xi32>
    %17 = vector.extract_strided_slice %5 {offsets = [1, 0], sizes = [1, 2], strides = [1, 1]} : vector<10x2xf32> to vector<1x2xf32>
    %18 = vector.shape_cast %16 : vector<8x1xi1> to vector<8x1xi1>
    %19 = vector.broadcast %18 : vector<8x1xi1> to vector<8x2xi1>
    %20 = vector.shape_cast %17 : vector<1x2xf32> to vector<1x2xf32>
    %21 = vector.broadcast %20 : vector<1x2xf32> to vector<8x2xf32>
    %22 = arith.select %19, %21, %14 : vector<8x2xi1>, vector<8x2xf32>
    %c2_i32 = arith.constant 2 : i32
    %23 = vector.broadcast %c2_i32 : i32 to vector<8x1xi32>
    %24 = arith.cmpi eq, %4, %23 : vector<8x1xi32>
    %25 = vector.extract_strided_slice %5 {offsets = [2, 0], sizes = [1, 2], strides = [1, 1]} : vector<10x2xf32> to vector<1x2xf32>
    %26 = vector.shape_cast %24 : vector<8x1xi1> to vector<8x1xi1>
    %27 = vector.broadcast %26 : vector<8x1xi1> to vector<8x2xi1>
    %28 = vector.shape_cast %25 : vector<1x2xf32> to vector<1x2xf32>
    %29 = vector.broadcast %28 : vector<1x2xf32> to vector<8x2xf32>
    %30 = arith.select %27, %29, %22 : vector<8x2xi1>, vector<8x2xf32>
    %c3_i32 = arith.constant 3 : i32
    %31 = vector.broadcast %c3_i32 : i32 to vector<8x1xi32>
    %32 = arith.cmpi eq, %4, %31 : vector<8x1xi32>
    %33 = vector.extract_strided_slice %5 {offsets = [3, 0], sizes = [1, 2], strides = [1, 1]} : vector<10x2xf32> to vector<1x2xf32>
    %34 = vector.shape_cast %32 : vector<8x1xi1> to vector<8x1xi1>
    %35 = vector.broadcast %34 : vector<8x1xi1> to vector<8x2xi1>
    %36 = vector.shape_cast %33 : vector<1x2xf32> to vector<1x2xf32>
    %37 = vector.broadcast %36 : vector<1x2xf32> to vector<8x2xf32>
    %38 = arith.select %35, %37, %30 : vector<8x2xi1>, vector<8x2xf32>
    %c4_i32 = arith.constant 4 : i32
    %39 = vector.broadcast %c4_i32 : i32 to vector<8x1xi32>
    %40 = arith.cmpi eq, %4, %39 : vector<8x1xi32>
    %41 = vector.extract_strided_slice %5 {offsets = [4, 0], sizes = [1, 2], strides = [1, 1]} : vector<10x2xf32> to vector<1x2xf32>
    %42 = vector.shape_cast %40 : vector<8x1xi1> to vector<8x1xi1>
    %43 = vector.broadcast %42 : vector<8x1xi1> to vector<8x2xi1>
    %44 = vector.shape_cast %41 : vector<1x2xf32> to vector<1x2xf32>
    %45 = vector.broadcast %44 : vector<1x2xf32> to vector<8x2xf32>
    %46 = arith.select %43, %45, %38 : vector<8x2xi1>, vector<8x2xf32>
    %c5_i32 = arith.constant 5 : i32
    %47 = vector.broadcast %c5_i32 : i32 to vector<8x1xi32>
    %48 = arith.cmpi eq, %4, %47 : vector<8x1xi32>
    %49 = vector.extract_strided_slice %5 {offsets = [5, 0], sizes = [1, 2], strides = [1, 1]} : vector<10x2xf32> to vector<1x2xf32>
    %50 = vector.shape_cast %48 : vector<8x1xi1> to vector<8x1xi1>
    %51 = vector.broadcast %50 : vector<8x1xi1> to vector<8x2xi1>
    %52 = vector.shape_cast %49 : vector<1x2xf32> to vector<1x2xf32>
    %53 = vector.broadcast %52 : vector<1x2xf32> to vector<8x2xf32>
    %54 = arith.select %51, %53, %46 : vector<8x2xi1>, vector<8x2xf32>
    %c6_i32 = arith.constant 6 : i32
    %55 = vector.broadcast %c6_i32 : i32 to vector<8x1xi32>
    %56 = arith.cmpi eq, %4, %55 : vector<8x1xi32>
    %57 = vector.extract_strided_slice %5 {offsets = [6, 0], sizes = [1, 2], strides = [1, 1]} : vector<10x2xf32> to vector<1x2xf32>
    %58 = vector.shape_cast %56 : vector<8x1xi1> to vector<8x1xi1>
    %59 = vector.broadcast %58 : vector<8x1xi1> to vector<8x2xi1>
    %60 = vector.shape_cast %57 : vector<1x2xf32> to vector<1x2xf32>
    %61 = vector.broadcast %60 : vector<1x2xf32> to vector<8x2xf32>
    %62 = arith.select %59, %61, %54 : vector<8x2xi1>, vector<8x2xf32>
    %c7_i32 = arith.constant 7 : i32
    %63 = vector.broadcast %c7_i32 : i32 to vector<8x1xi32>
    %64 = arith.cmpi eq, %4, %63 : vector<8x1xi32>
    %65 = vector.extract_strided_slice %5 {offsets = [7, 0], sizes = [1, 2], strides = [1, 1]} : vector<10x2xf32> to vector<1x2xf32>
    %66 = vector.shape_cast %64 : vector<8x1xi1> to vector<8x1xi1>
    %67 = vector.broadcast %66 : vector<8x1xi1> to vector<8x2xi1>
    %68 = vector.shape_cast %65 : vector<1x2xf32> to vector<1x2xf32>
    %69 = vector.broadcast %68 : vector<1x2xf32> to vector<8x2xf32>
    %70 = arith.select %67, %69, %62 : vector<8x2xi1>, vector<8x2xf32>
    %c8_i32 = arith.constant 8 : i32
    %71 = vector.broadcast %c8_i32 : i32 to vector<8x1xi32>
    %72 = arith.cmpi eq, %4, %71 : vector<8x1xi32>
    %73 = vector.extract_strided_slice %5 {offsets = [8, 0], sizes = [1, 2], strides = [1, 1]} : vector<10x2xf32> to vector<1x2xf32>
    %74 = vector.shape_cast %72 : vector<8x1xi1> to vector<8x1xi1>
    %75 = vector.broadcast %74 : vector<8x1xi1> to vector<8x2xi1>
    %76 = vector.shape_cast %73 : vector<1x2xf32> to vector<1x2xf32>
    %77 = vector.broadcast %76 : vector<1x2xf32> to vector<8x2xf32>
    %78 = arith.select %75, %77, %70 : vector<8x2xi1>, vector<8x2xf32>
    %c9_i32 = arith.constant 9 : i32
    %79 = vector.broadcast %c9_i32 : i32 to vector<8x1xi32>
    %80 = arith.cmpi eq, %4, %79 : vector<8x1xi32>
    %81 = vector.extract_strided_slice %5 {offsets = [9, 0], sizes = [1, 2], strides = [1, 1]} : vector<10x2xf32> to vector<1x2xf32>
    %82 = vector.shape_cast %80 : vector<8x1xi1> to vector<8x1xi1>
    %83 = vector.broadcast %82 : vector<8x1xi1> to vector<8x2xi1>
    %84 = vector.shape_cast %81 : vector<1x2xf32> to vector<1x2xf32>
    %85 = vector.broadcast %84 : vector<1x2xf32> to vector<8x2xf32>
    %86 = arith.select %83, %85, %78 : vector<8x2xi1>, vector<8x2xf32>
    %87 = arith.subf %3, %86 : vector<8x2xf32>
    %88 = arith.mulf %87, %87 : vector<8x2xf32>
    %cst_7 = arith.constant dense<0.000000e+00> : vector<8xf32>
    %89 = vector.multi_reduction <add>, %88, %cst_7 [1] : vector<8x2xf32> to vector<8xf32>
    %90 = vector.shape_cast %89 : vector<8xf32> to vector<8x1xf32>
    %cst_8 = arith.constant 9.99999996E-13 : f32
    %cst_9 = arith.constant 9.99999995E+11 : f32
    %91 = vector.broadcast %cst_8 : f32 to vector<8x1xf32>
    %92 = arith.maximumf %91, %90 : vector<8x1xf32>
    %93 = vector.broadcast %cst_9 : f32 to vector<8x1xf32>
    %94 = arith.minimumf %93, %92 : vector<8x1xf32>
    %c1_i32_10 = arith.constant 1 : i32
    %95 = arith.muli %arg0, %c1_i32_10 : i32
    %96 = arith.addi %95, %arg1 : i32
    %97 = tpu.iota {dimensions = array<i32: 0>} : vector<8x1xi32>
    %c8_i32_11 = arith.constant 8 : i32
    %98 = arith.muli %96, %c8_i32_11 : i32
    %99 = vector.broadcast %98 : i32 to vector<8x1xi32>
    %100 = arith.addi %99, %97 : vector<8x1xi32>
    %c8_i32_12 = arith.constant 8 : i32
    %101 = vector.broadcast %c8_i32_12 : i32 to vector<8x1xi32>
    %102 = arith.cmpi slt, %100, %101 : vector<8x1xi32>
    %c0_13 = arith.constant 0 : index
    %c0_14 = arith.constant 0 : index
    %103 = vector.load %arg6[%c0_13, %c0_14] : memref<8x1xf32, #tpu.memory_space<vmem>>, vector<8x1xf32>
    %cst_15 = arith.constant 0.000000e+00 : f32
    %104 = vector.broadcast %cst_15 : f32 to vector<8x1xf32>
    %105 = arith.select %102, %94, %104 : vector<8x1xi1>, vector<8x1xf32>
    %106 = arith.addf %103, %105 : vector<8x1xf32>
    %c0_16 = arith.constant 0 : index
    %c0_17 = arith.constant 0 : index
    %107 = vector.load %arg6[%c0_16, %c0_17] : memref<8x1xf32, #tpu.memory_space<vmem>>, vector<8x1xf32>
    tpu.vector_store %arg6[%c0_16, %c0_17], %106 {strides = array<i32>} : memref<8x1xf32, #tpu.memory_space<vmem>>, vector<8x1xf32>,
    %c0_i32_18 = arith.constant 0 : i32
    %108 = arith.cmpi eq, %arg1, %c0_i32_18 : i32
    %109 = arith.extui %108 : i1 to i32
    %c0_i32_19 = arith.constant 0 : i32
    %110 = arith.cmpi ne, %109, %c0_i32_19 : i32
    scf.if %110 {
      %c0_20 = arith.constant 0 : index
      %c0_21 = arith.constant 0 : index
      %111 = vector.load %arg6[%c0_20, %c0_21] : memref<8x1xf32, #tpu.memory_space<vmem>>, vector<8x1xf32>
      %112 = vector.shape_cast %111 : vector<8x1xf32> to vector<1x8x1xf32>
      %cst_22 = arith.constant dense<0.000000e+00> : vector<1xf32>
      %113 = vector.multi_reduction <add>, %112, %cst_22 [1, 2] : vector<1x8x1xf32> to vector<1xf32>
      %114 = vector.shape_cast %113 : vector<1xf32> to vector<1x1x1xf32>
      %115 = vector.extract %114[0, 0, 0] : f32 from vector<1x1x1xf32>
      %116 = vector.broadcast %115 : f32 to vector<1x1x1xf32>
      %c0_23 = arith.constant 0 : index
      %c0_24 = arith.constant 0 : index
      %c0_25 = arith.constant 0 : index
      %117 = vector.load %arg5[%c0_23, %c0_24, %c0_25] : memref<1x1x1xf32, #tpu.memory_space<vmem>>, vector<1x1x1xf32>
      tpu.vector_store %arg5[%c0_23, %c0_24, %c0_25], %116 {strides = array<i32>} : memref<1x1x1xf32, #tpu.memory_space<vmem>>, vector<1x1x1xf32>,
    } else {
    }
    return
  }
  func.func @transform_0(%arg0: i32, %arg1: i32) -> (i32, i32) {
    %c1_i32 = arith.constant 1 : i32
    %0 = arith.muli %arg0, %c1_i32 : i32
    %1 = arith.addi %0, %arg1 : i32
    %c0_i32 = arith.constant 0 : i32
    %2 = arith.minsi %1, %c0_i32 : i32
    %c0_i32_0 = arith.constant 0 : i32
    %c0_i32_1 = arith.constant 0 : i32
    return %2, %c0_i32_0 : i32, i32
  }
  func.func @transform_1(%arg0: i32, %arg1: i32) -> (i32, i32) {
    %c1_i32 = arith.constant 1 : i32
    %0 = arith.muli %arg0, %c1_i32 : i32
    %1 = arith.addi %0, %arg1 : i32
    %c0_i32 = arith.constant 0 : i32
    %2 = arith.minsi %1, %c0_i32 : i32
    %c0_i32_0 = arith.constant 0 : i32
    %c0_i32_1 = arith.constant 0 : i32
    return %2, %c0_i32_0 : i32, i32
  }
  func.func @transform_2(%arg0: i32, %arg1: i32) -> (i32, i32) {
    %c0_i32 = arith.constant 0 : i32
    %c0_i32_0 = arith.constant 0 : i32
    %c0_i32_1 = arith.constant 0 : i32
    return %c0_i32, %c0_i32_0 : i32, i32
  }
  func.func @transform_3(%arg0: i32, %arg1: i32) -> (i32, i32, i32) {
    %c0_i32 = arith.constant 0 : i32
    %c0_i32_0 = arith.constant 0 : i32
    %c0_i32_1 = arith.constant 0 : i32
    return %arg0, %c0_i32, %c0_i32_0 : i32, i32, i32
  }
}

</mosaic_0001>

<llo_original>
// kernel: tpu_custom_call.1
$region0: #{tpu_custom_call.1}
  #allocation0 [shape = 'u32[]', space=smem, size = 0x4, offset = 0x4, fixed_abs, tag = 'smem constant byte address 0x4 - core index']
  #allocation1 [shape = 'u32[144,128]{1,0:T(1,128)}', space=vmem, size = 0x12000, scoped, tag = 'internal scratch']
  #allocation2 [shape = 'f32[8,1]{1,0:T(8,128)}', space=vmem, size = 0x1000, scoped, tag = 'scratch operand']
  %s0 = inlined_call_operand.vmem [shape: s32[8,1], index: 0, kind: input, shape index: {}]
  %s1 = inlined_call_operand.vmem [shape: f32[8,2], index: 1, kind: input, shape index: {}]
  %s2 = inlined_call_operand.vmem [shape: f32[10,2], index: 2, kind: input, shape index: {}]
  %s3 = inlined_call_operand.vmem [shape: f32[2,1,1], index: 3, kind: output, shape index: {}]
  %s4 = sld [smem:[#allocation0]]
  $region53: #{tpu_custom_call.1} parent=0
    _
  %s6 = ssub.s32 1, %s4
  %s7 = scalar_select 0, %s6, %s4
  loop: start=0, step=1, limit=4
  $region2: #{tpu_custom_call.1} parent=0 // loop_pre_header
    _
  $region3: #{tpu_custom_call.1} parent=0 // loop_header
    %s9 = sphi 0, %s13
    %p10 = scmp.ge.s32.totalorder %s9, 4
    %s16 = sphi 0, %s28
    %s17 = sphi 0, %s24
    %s18 = sphi 0, %s16
    %s19 = sphi 0, %s17
    %s20 = sphi 0, %s18
    %s21 = sphi 0, %s19
    %s37 = sphi 0, %s39
    %s40 = sphi 0, %s37
    %s41 = sphi 0, %s40
    %s57 = sphi 0, %s41
    %s69 = sphi 0, %s71
    %s72 = sphi 0, %s69
    %s73 = sphi 0, %s72
    %s89 = sphi 0, %s73
    %s93 = sphi 0, %s93
    %s95 = sphi 0, %s93
    %s96 = sphi 0, %s95
    %s110 = sphi 0, %s96
    %s116 = sphi 0, %s118
    %s119 = sphi 0, %s116
    %s120 = sphi 0, %s119
    %s136 = sphi 0, %s120
  $region4: #{tpu_custom_call.1} parent=0 // loop_header_branch
    %12 = sbr.rel (%p10) target = $region8
  $region5: #{tpu_custom_call.1} parent=0 // loop_body
    %s14 = ssub.s32 %s9, 1
    %s15 = ssub.s32 %s9, 2
    %s22 = sadd.s32 1, %s17
    %p23 = scmp.ge.s32.totalorder %s22, 1
    %s24 = scalar_select %p23, 0, %s22
    %s25 = sadd.s32 1, %s16
    %s26 = scalar_select %p23, %s25, %s16
    %p27 = scmp.ge.s32.totalorder %s26, 2
    %s28 = scalar_select %p27, 0, %s26
    %s29 = sadd.s32 %s16, %s17
    %p30 = scmp.lt.s32.totalorder %s29, 0
    %s31 = scalar_select %p30, %s29, 0
    %s32 = sadd.s32 %s28, %s24
    %p33 = scmp.lt.s32.totalorder %s32, 0
    %s34 = scalar_select %p33, %s32, 0
    %s35 = ssub.s32 %s31, %s34
    %p36 = scmp.eq.s32.totalorder %s35, 0
    %s38 = sadd.s32 %s37, 1
    %s39 = scalar_select %p36, %s37, %s38
    %p42 = pneg %p36
    %p43 = scmp.eq.s32.totalorder %s9, 1
    %p44 = por %p42, %p43
    %p45 = scmp.ne.s32.totalorder %s37, %s40
    %p46 = scmp.eq.s32.totalorder %s9, 0
    %p47 = por %p45, %p46
    %p48 = scmp.ne.s32.totalorder %s37, %s40
    %p49 = scmp.eq.s32.totalorder %s14, 1
    %p50 = por %p48, %p49
    %p51 = scmp.ne.s32.totalorder %s40, %s41
    %p52 = scmp.eq.s32.totalorder %s14, 0
    %p53 = por %p51, %p52
    %p54 = scmp.ne.s32.totalorder %s40, %s41
    %p55 = scmp.eq.s32.totalorder %s15, 1
    %p56 = por %p54, %p55
    %p58 = scmp.ne.s32.totalorder %s41, %s57
    %p59 = scmp.eq.s32.totalorder %s15, 0
    %p60 = por %p58, %p59
    %s61 = sadd.s32 %s16, %s17
    %p62 = scmp.lt.s32.totalorder %s61, 0
    %s63 = scalar_select %p62, %s61, 0
    %s64 = sadd.s32 %s28, %s24
    %p65 = scmp.lt.s32.totalorder %s64, 0
    %s66 = scalar_select %p65, %s64, 0
    %s67 = ssub.s32 %s63, %s66
    %p68 = scmp.eq.s32.totalorder %s67, 0
    %s70 = sadd.s32 %s69, 1
    %s71 = scalar_select %p68, %s69, %s70
    %p74 = pneg %p68
    %p75 = scmp.eq.s32.totalorder %s9, 1
    %p76 = por %p74, %p75
    %p77 = scmp.ne.s32.totalorder %s69, %s72
    %p78 = scmp.eq.s32.totalorder %s9, 0
    %p79 = por %p77, %p78
    %p80 = scmp.ne.s32.totalorder %s69, %s72
    %p81 = scmp.eq.s32.totalorder %s14, 1
    %p82 = por %p80, %p81
    %p83 = scmp.ne.s32.totalorder %s72, %s73
    %p84 = scmp.eq.s32.totalorder %s14, 0
    %p85 = por %p83, %p84
    %p86 = scmp.ne.s32.totalorder %s72, %s73
    %p87 = scmp.eq.s32.totalorder %s15, 1
    %p88 = por %p86, %p87
    %p90 = scmp.ne.s32.totalorder %s73, %s89
    %p91 = scmp.eq.s32.totalorder %s15, 0
    %p92 = por %p90, %p91
    %s94 = sadd.s32 %s93, 1
    %p97 = scmp.eq.s32.totalorder %s9, 1
    %p98 = scmp.ne.s32.totalorder %s93, %s95
    %p99 = scmp.eq.s32.totalorder %s9, 0
    %p100 = por %p98, %p99
    %p101 = scmp.ne.s32.totalorder %s93, %s95
    %p102 = scmp.eq.s32.totalorder %s14, 1
    %p103 = por %p101, %p102
    %p104 = scmp.ne.s32.totalorder %s95, %s96
    %p105 = scmp.eq.s32.totalorder %s14, 0
    %p106 = por %p104, %p105
    %p107 = scmp.ne.s32.totalorder %s95, %s96
    %p108 = scmp.eq.s32.totalorder %s15, 1
    %p109 = por %p107, %p108
    %p111 = scmp.ne.s32.totalorder %s96, %s110
    %p112 = scmp.eq.s32.totalorder %s15, 0
    %p113 = por %p111, %p112
    %s114 = ssub.s32 %s16, %s28
    %p115 = scmp.eq.s32.totalorder %s114, 0
    %s117 = sadd.s32 %s116, 1
    %s118 = scalar_select %p115, %s116, %s117
    %p121 = pneg %p115
    %p122 = scmp.eq.s32.totalorder %s9, 1
    %p123 = por %p121, %p122
    %p124 = scmp.ne.s32.totalorder %s116, %s119
    %p125 = scmp.eq.s32.totalorder %s9, 0
    %p126 = por %p124, %p125
    %p127 = scmp.ne.s32.totalorder %s116, %s119
    %p128 = scmp.eq.s32.totalorder %s14, 1
    %p129 = por %p127, %p128
    %p130 = scmp.ne.s32.totalorder %s119, %s120
    %p131 = scmp.eq.s32.totalorder %s14, 0
    %p132 = por %p130, %p131
    %p133 = scmp.ne.s32.totalorder %s119, %s120
    %p134 = scmp.eq.s32.totalorder %s15, 1
    %p135 = por %p133, %p134
    %p137 = scmp.ne.s32.totalorder %s120, %s136
    %p138 = scmp.eq.s32.totalorder %s15, 0
    %p139 = por %p137, %p138
    %p140 = scmp.le.s32.totalorder 1, %s9
    %p141 = scmp.lt.s32.totalorder %s9, 3
    %p142 = pnand %p140, %p141
    %p143 = pneg %p142
    // Predicated region
    $region9: #{tpu_custom_call.1} parent=5 // pred_check
      _
    $region10: #{tpu_custom_call.1} parent=5 // pred_check_branch
      %145 = sbr.rel (%p142) target = $region12
    $region11: #{tpu_custom_call.1} parent=5 // pred_region
      %s146 = ssub.s32 %s9, 1
      // Predicated region
      $region13: #{tpu_custom_call.1} parent=11 // pred_check
        %p147 = pneg %p106
      $region14: #{tpu_custom_call.1} parent=11 // pred_check_branch
        %149 = sbr.rel (%p147) target = $region16
      $region15: #{tpu_custom_call.1} parent=11 // pred_region
        _
      $region16: #{tpu_custom_call.1} parent=11 // pred_fallthru
        _
    $region12: #{tpu_custom_call.1} parent=5 // pred_fallthru
      _
    %p150 = scmp.lt.s32.totalorder %s9, 2
    // Predicated region
    $region17: #{tpu_custom_call.1} parent=5 // pred_check
      %p151 = pneg %p150
    $region18: #{tpu_custom_call.1} parent=5 // pred_check_branch
      %153 = sbr.rel (%p151) target = $region20
    $region19: #{tpu_custom_call.1} parent=5 // pred_region
      // Predicated region
      $region21: #{tpu_custom_call.1} parent=19 // pred_check
        %p154 = pneg %p47
      $region22: #{tpu_custom_call.1} parent=19 // pred_check_branch
        %156 = sbr.rel (%p154) target = $region24
      $region23: #{tpu_custom_call.1} parent=19 // pred_region
        %s157 = sadd.s32 %s16, %s17
        %p158 = scmp.lt.s32.totalorder %s157, 0
        %s159 = scalar_select %p158, %s157, 0
        %p160 = scmp.lt.s32.totalorder %s159, 0
        %s161 = scalar_select %p160, %s159, 0
        %s162 = smul.addr %s161, 8
        %s163 = scalar_lea.vmem %s0, %s162
        %s164 = sadd.s32 %s16, %s17
        %p165 = scmp.lt.s32.totalorder %s164, 0
        %s166 = scalar_select %p165, %s164, 0
      $region24: #{tpu_custom_call.1} parent=19 // pred_fallthru
        _
      // Predicated region
      $region25: #{tpu_custom_call.1} parent=19 // pred_check
        %p167 = pneg %p79
      $region26: #{tpu_custom_call.1} parent=19 // pred_check_branch
        %169 = sbr.rel (%p167) target = $region28
      $region27: #{tpu_custom_call.1} parent=19 // pred_region
        %s170 = sadd.s32 %s16, %s17
        %p171 = scmp.lt.s32.totalorder %s170, 0
        %s172 = scalar_select %p171, %s170, 0
        %p173 = scmp.lt.s32.totalorder %s172, 0
        %s174 = scalar_select %p173, %s172, 0
        %s175 = smul.addr %s174, 8
        %s176 = scalar_lea.vmem %s1, %s175
        %s177 = sadd.s32 %s16, %s17
        %p178 = scmp.lt.s32.totalorder %s177, 0
        %s179 = scalar_select %p178, %s177, 0
      $region28: #{tpu_custom_call.1} parent=19 // pred_fallthru
        _
    $region20: #{tpu_custom_call.1} parent=5 // pred_fallthru
      _
    %p180 = scmp.le.s32.totalorder 1, %s9
    %p181 = scmp.lt.s32.totalorder %s9, 3
    %p182 = pnand %p180, %p181
    %p183 = pneg %p182
    // Predicated region
    $region29: #{tpu_custom_call.1} parent=5 // pred_check
      _
    $region30: #{tpu_custom_call.1} parent=5 // pred_check_branch
      %185 = sbr.rel (%p182) target = $region32
    $region31: #{tpu_custom_call.1} parent=5 // pred_region
      %s186 = ssub.s32 %s9, 1
      %s187 = sadd.s32 %s18, %s19
      %p188 = scmp.lt.s32.totalorder %s187, 0
      %s189 = scalar_select %p188, %s187, 0
      %p190 = scmp.lt.s32.totalorder %s189, 0
      %s191 = scalar_select %p190, %s189, 0
      %s192 = smul.addr %s191, 8
      %s193 = scalar_lea.vmem %s0, %s192
      %p194 = pneg %p53
      %p195 = pneg %p50
      %s196 = sadd.s32 %s18, %s19
      %p197 = scmp.lt.s32.totalorder %s196, 0
      %s198 = scalar_select %p197, %s196, 0
      %p199 = scmp.lt.s32.totalorder %s198, 0
      %s200 = scalar_select %p199, %s198, 0
      %s201 = smul.addr %s200, 8
      %s202 = scalar_lea.vmem %s1, %s201
      %p203 = pneg %p85
      %p204 = pneg %p82
      %p205 = pneg %p106
      %p206 = pneg %p103
      %p207 = pneg %p132
      %p208 = pneg %p129
      %p209 = scmp.lt.s32.totalorder %s18, 1
      %s210 = scalar_select %p209, %s18, 1
      %s211 = scalar_lea.vmem %s3, %s210
      %s212 = sadd.s32 %s18, %s19
      %p213 = scmp.lt.s32.totalorder %s212, 0
      %s214 = scalar_select %p213, %s212, 0
      %p215 = scmp.lt.s32.totalorder %s214, 0
      %s216 = scalar_select %p215, %s214, 0
      %s217 = smul.addr %s216, 8
      %s218 = scalar_lea.vmem %s0, %s217
      %s219 = sadd.s32 %s18, %s19
      %p220 = scmp.lt.s32.totalorder %s219, 0
      %s221 = scalar_select %p220, %s219, 0
      %s222 = sadd.s32 %s18, %s19
      %p223 = scmp.lt.s32.totalorder %s222, 0
      %s224 = scalar_select %p223, %s222, 0
      %p225 = scmp.lt.s32.totalorder %s224, 0
      %s226 = scalar_select %p225, %s224, 0
      %s227 = smul.addr %s226, 8
      %s228 = scalar_lea.vmem %s1, %s227
      %s229 = sadd.s32 %s18, %s19
      %p230 = scmp.lt.s32.totalorder %s229, 0
      %s231 = scalar_select %p230, %s229, 0
      %p232 = scmp.lt.s32.totalorder %s18, 1
      %s233 = scalar_select %p232, %s18, 1
      %s234 = scalar_lea.vmem %s3, %s233
      %p235 = scmp.eq.s32.totalorder %s19, 0
      // Predicated region
      $region33: #{tpu_custom_call.1} parent=31 // pred_check
        %p236 = pneg %p235
      $region34: #{tpu_custom_call.1} parent=31 // pred_check_branch
        %238 = sbr.rel (%p236) target = $region36
      $region35: #{tpu_custom_call.1} parent=31 // pred_region
        %vm239 = vcmask 7168
        %240 = vst.msk [vmem:[#allocation2] sm:$0xff] %vm239, 0.0
      $region36: #{tpu_custom_call.1} parent=31 // pred_fallthru
        _
      %v241 = vld [vmem:[%s228] sm:$0xff]
      %v242 = vld [vmem:[%s218] sm:$0xff]
      %v243 = vld [vmem:[%s2] sm:$0xff]
      %v244 = vld [vmem:[%s2 + $0x8] sm:$0x3]
      %vm245 = vcmp.eq.s32.totalorder %v242, 0
      %v246 = vsel %vm245, 1, 0
      %247 = vset.pattern.permute.xlu0 0
      %248 = vperm.xlu0 %247, %v246
      %v249 = vpop.permute.xlu0 %248
      %vm250 = vcmp.eq.s32.totalorder %v249, 1
      %v251 = vlaneseq
      %v252 = vshrl.u32 %v251, 7
      %v253 = vsub.s32 0, %v252
      %v254 = vrot.slane %v243, %v253
      %v255 = vsel %vm250, %v254, 0.0
      %vm256 = vcmp.eq.s32.totalorder %v242, 1
      %v257 = vsel %vm256, 1, 0
      %258 = vset.pattern.permute.xlu0 0
      %259 = vperm.xlu0 %258, %v257
      %v260 = vpop.permute.xlu0 %259
      %vm261 = vcmp.eq.s32.totalorder %v260, 1
      %v262 = vlaneseq
      %v263 = vshrl.u32 %v262, 7
      %v264 = vsub.s32 1, %v263
      %v265 = vrot.slane %v243, %v264
      %v266 = vsel %vm261, %v265, %v255
      %vm267 = vcmp.eq.s32.totalorder %v242, 2
      %v268 = vsel %vm267, 1, 0
      %269 = vset.pattern.permute.xlu0 0
      %270 = vperm.xlu0 %269, %v268
      %v271 = vpop.permute.xlu0 %270
      %vm272 = vcmp.eq.s32.totalorder %v271, 1
      %v273 = vlaneseq
      %v274 = vshrl.u32 %v273, 7
      %v275 = vsub.s32 2, %v274
      %v276 = vrot.slane %v243, %v275
      %v277 = vsel %vm272, %v276, %v266
      %vm278 = vcmp.eq.s32.totalorder %v242, 3
      %v279 = vsel %vm278, 1, 0
      %280 = vset.pattern.permute.xlu0 0
      %281 = vperm.xlu0 %280, %v279
      %v282 = vpop.permute.xlu0 %281
      %vm283 = vcmp.eq.s32.totalorder %v282, 1
      %v284 = vlaneseq
      %v285 = vshrl.u32 %v284, 7
      %v286 = vsub.s32 3, %v285
      %v287 = vrot.slane %v243, %v286
      %v288 = vsel %vm283, %v287, %v277
      %vm289 = vcmp.eq.s32.totalorder %v242, 4
      %v290 = vsel %vm289, 1, 0
      %291 = vset.pattern.permute.xlu0 0
      %292 = vperm.xlu0 %291, %v290
      %v293 = vpop.permute.xlu0 %292
      %vm294 = vcmp.eq.s32.totalorder %v293, 1
      %v295 = vlaneseq
      %v296 = vshrl.u32 %v295, 7
      %v297 = vsub.s32 4, %v296
      %v298 = vrot.slane %v243, %v297
      %v299 = vsel %vm294, %v298, %v288
      %vm300 = vcmp.eq.s32.totalorder %v242, 5
      %v301 = vsel %vm300, 1, 0
      %302 = vset.pattern.permute.xlu0 0
      %303 = vperm.xlu0 %302, %v301
      %v304 = vpop.permute.xlu0 %303
      %vm305 = vcmp.eq.s32.totalorder %v304, 1
      %v306 = vlaneseq
      %v307 = vshrl.u32 %v306, 7
      %v308 = vsub.s32 5, %v307
      %v309 = vrot.slane %v243, %v308
      %v310 = vsel %vm305, %v309, %v299
      %vm311 = vcmp.eq.s32.totalorder %v242, 6
      %v312 = vsel %vm311, 1, 0
      %313 = vset.pattern.permute.xlu0 0
      %314 = vperm.xlu0 %313, %v312
      %v315 = vpop.permute.xlu0 %314
      %vm316 = vcmp.eq.s32.totalorder %v315, 1
      %v317 = vlaneseq
      %v318 = vshrl.u32 %v317, 7
      %v319 = vsub.s32 6, %v318
      %v320 = vrot.slane %v243, %v319
      %v321 = vsel %vm316, %v320, %v310
      %vm322 = vcmp.eq.s32.totalorder %v242, 7
      %v323 = vsel %vm322, 1, 0
      %324 = vset.pattern.permute.xlu0 0
      %325 = vperm.xlu0 %324, %v323
      %v326 = vpop.permute.xlu0 %325
      %vm327 = vcmp.eq.s32.totalorder %v326, 1
      %v328 = vlaneseq
      %v329 = vshrl.u32 %v328, 7
      %v330 = vsub.s32 7, %v329
      %v331 = vrot.slane %v243, %v330
      %v332 = vsel %vm327, %v331, %v321
      %vm333 = vcmp.eq.s32.totalorder %v242, 8
      %v334 = vsel %vm333, 1, 0
      %335 = vset.pattern.permute.xlu0 0
      %336 = vperm.xlu0 %335, %v334
      %v337 = vpop.permute.xlu0 %336
      %vm338 = vcmp.eq.s32.totalorder %v337, 1
      %v339 = vlaneseq
      %v340 = vshrl.u32 %v339, 7
      %v341 = vsub.s32 0, %v340
      %v342 = vrot.slane %v244, %v341
      %v343 = vsel %vm338, %v342, %v332
      %vm344 = vcmp.eq.s32.totalorder %v242, 9
      %v345 = vsel %vm344, 1, 0
      %346 = vset.pattern.permute.xlu0 0
      %347 = vperm.xlu0 %346, %v345
      %v348 = vpop.permute.xlu0 %347
      %vm349 = vcmp.eq.s32.totalorder %v348, 1
      %v350 = vlaneseq
      %v351 = vshrl.u32 %v350, 7
      %v352 = vsub.s32 1, %v351
      %v353 = vrot.slane %v244, %v352
      %v354 = vsel %vm349, %v353, %v343
      %v355 = vsub.f32 %v241, %v354
      %v356 = vmul.f32 %v355, %v355
      %vm357 = vcmask 15360
      %v358 = vsel %vm357, %v356, 0.0
      %359 = vadd.xlane.f32.xlu0 %v358
      %v360 = vpop.xlane.xlu0 %359
      %v361 = vmax.f32 %v360, 1e-12
      %v362 = vmin.f32 %v361, 1e+12
      %s363 = sadd.s32 %s18, %s19
      %v364 = vlaneseq
      %v365 = vshrl.u32 %v364, 7
      %s366 = smul.u32 %s363, 8
      %v367 = vstv %s366
      %v368 = vadd.s32 %v367, %v365
      %vm369 = vcmp.lt.s32.totalorder %v368, 8
      %v370 = vld [vmem:[#allocation2] sm:$0xff]
      %v371 = vsel %vm369, %v362, 0.0
      %v372 = vadd.f32 %v370, %v371
      %vm373 = vcmask 7168
      %374 = vst.msk [vmem:[#allocation2] sm:$0xff] %vm373, %v372
      // Predicated region
      $region37: #{tpu_custom_call.1} parent=31 // pred_check
        %p375 = pneg %p235
      $region38: #{tpu_custom_call.1} parent=31 // pred_check_branch
        %377 = sbr.rel (%p375) target = $region40
      $region39: #{tpu_custom_call.1} parent=31 // pred_region
        %v378 = vld [vmem:[#allocation2] sm:$0xff]
        %v379 = vsel %vm373, %v378, 0.0
        %380 = vadd.xlane.f32.xlu0 %v379
        %v381 = vpop.xlane.xlu0 %380
        %v382 = vrot.slane %v381, 4
        %v383 = vadd.f32 %v381, %v382
        %v384 = vrot.slane %v383, 2
        %v385 = vadd.f32 %v383, %v384
        %v386 = vrot.slane %v385, 1
        %v387 = vadd.f32 %v385, %v386
        %s388 = vtos %v387
        %v389 = vstv %s388
        %vm390 = vcmask 0
        %391 = vst.msk [vmem:[%s234] sm:$0x1] %vm390, %v389
      $region40: #{tpu_custom_call.1} parent=31 // pred_fallthru
        _
      %p392 = scmp.lt.s32.totalorder %s18, 1
      %s393 = scalar_select %p392, %s18, 1
      %s394 = scalar_lea.vmem %s3, %s393
      // Predicated region
      $region41: #{tpu_custom_call.1} parent=31 // pred_check
        %p395 = pneg %p129
      $region42: #{tpu_custom_call.1} parent=31 // pred_check_branch
        %397 = sbr.rel (%p395) target = $region44
      $region43: #{tpu_custom_call.1} parent=31 // pred_region
        _
      $region44: #{tpu_custom_call.1} parent=31 // pred_fallthru
        _
    $region32: #{tpu_custom_call.1} parent=5 // pred_fallthru
      _
    %p398 = scmp.le.s32.totalorder 2, %s9
    // Predicated region
    $region45: #{tpu_custom_call.1} parent=5 // pred_check
      %p399 = pneg %p398
    $region46: #{tpu_custom_call.1} parent=5 // pred_check_branch
      %401 = sbr.rel (%p399) target = $region48
    $region47: #{tpu_custom_call.1} parent=5 // pred_region
      %s402 = ssub.s32 %s9, 2
      // Predicated region
      $region49: #{tpu_custom_call.1} parent=47 // pred_check
        %p403 = pneg %p135
      $region50: #{tpu_custom_call.1} parent=47 // pred_check_branch
        %405 = sbr.rel (%p403) target = $region52
      $region51: #{tpu_custom_call.1} parent=47 // pred_region
        %p406 = scmp.lt.s32.totalorder %s20, 1
        %s407 = scalar_select %p406, %s20, 1
        %s408 = scalar_lea.vmem %s3, %s407
      $region52: #{tpu_custom_call.1} parent=47 // pred_fallthru
        _
    $region48: #{tpu_custom_call.1} parent=5 // pred_fallthru
      _
  $region6: #{tpu_custom_call.1} parent=0 // loop_footer
    %s13 = sadd.s32 1, %s9
  $region7: #{tpu_custom_call.1} parent=0 // loop_footer_branch
    %8 = sbr.rel target = $region3
  $region8: #{tpu_custom_call.1} parent=0 // loop_exit
    _

</llo_original>
